<compile_context>
chip_gen: v6e
topology: v6e:2x2x1
jax: 0.10.0
libtpu: 0.0.40
codegen_flags: <defaults>
</compile_context>

<pallas_src>
import jax
import jax.numpy as jnp
from jax.experimental import pallas as pl
from jax.experimental.pallas import tpu as pltpu


def _round_up(x, m):
    return (x + m - 1) // m * m


def _vmem_limit_bytes():
    """~85% of physical VMEM (v5e/v6e: ~108 MiB, v7x: ~54 MiB); safe fallback."""
    try:
        cap = pltpu.get_tpu_info().vmem_capacity_bytes
    except Exception:
        cap = 64 * 1024 * 1024  # conservative (v7x-sized) fallback
    return int(cap * 0.85)


# --------------------------------------------------------------------------
# Kernel 1: Linear-1 + BatchNorm1d (training statistics) + ReLU
# grid = (hidden tiles,)  -- each tile owns its own per-feature batch stats.
# --------------------------------------------------------------------------
def hidden_kernel(x_ref, w1_ref, b1_ref, gamma_ref, beta_ref, h_ref):
    # Linear-1 for this hidden tile: (B, dim) @ (dim, tile_h) -> f32.
    h = jnp.dot(x_ref[...], w1_ref[...], preferred_element_type=jnp.float32)
    h = h + b1_ref[...]

    # BatchNorm1d, training semantics (biased variance, eps=1e-5), f32,
    # one-pass: var = E[h^2] - mean^2; mean folded into the shift.
    mean = jnp.mean(h, axis=0, keepdims=True)                       # (1, tile_h)
    mean_sq = jnp.mean(h * h, axis=0, keepdims=True)                # (1, tile_h)
    var = jnp.maximum(mean_sq - mean * mean, 0.0)
    scale = gamma_ref[...] * jax.lax.rsqrt(var + 1e-5)              # EUP rsqrt
    shift = beta_ref[...] - mean * scale

    # Fused scale/shift + ReLU, then cast to the activation-cache dtype.
    h_ref[...] = jnp.maximum(h * scale + shift, 0.0).astype(h_ref.dtype)


# --------------------------------------------------------------------------
# Kernel 2: Linear-2 with reduction over hidden tiles.
# grid = (proj tiles [parallel], hidden tiles [arbitrary]).
# --------------------------------------------------------------------------
def proj_kernel(h_ref, w2_ref, b2_ref, o_ref, acc_ref):
    k = pl.program_id(1)

    @pl.when(k == 0)
    def _init():
        acc_ref[...] = jnp.zeros_like(acc_ref)

    acc_ref[...] += jnp.dot(h_ref[...], w2_ref[...],
                            preferred_element_type=jnp.float32)

    @pl.when(k == pl.num_programs(1) - 1)
    def _finalize():
        o_ref[...] = (acc_ref[...] + b2_ref[...]).astype(o_ref.dtype)


def mlp_forward(x, w1_t, b1, gamma, beta, w2_t, b2, *,
                matmul_dtype=jnp.bfloat16, tile_h=512, tile_p=256):
    """Fused Linear -> BatchNorm1d(train) -> ReLU -> Linear.

    Weights are passed pre-transposed as (in, out).  BN statistics and the
    final accumulation are always f32; `matmul_dtype` controls MXU operand
    precision and the (B, hidden) activation cache between the two kernels.
    """
    B, dim = x.shape
    hidden = w1_t.shape[1]
    proj = w2_t.shape[1]

    # 128-aligned, lane-dense feature tiles; pad so tiles divide evenly.
    tile_h = min(tile_h, _round_up(hidden, 128))
    tile_p = min(tile_p, _round_up(proj, 128))
    hidden_p = _round_up(hidden, tile_h)
    proj_p = _round_up(proj, tile_p)

    def pad_cols(a, n):
        return a if a.shape[1] == n else jnp.pad(a, ((0, 0), (0, n - a.shape[1])))

    def pad_rows(a, n):
        return a if a.shape[0] == n else jnp.pad(a, ((0, n - a.shape[0]), (0, 0)))

    x_c = x.astype(matmul_dtype)
    w1_p = pad_cols(w1_t, hidden_p).astype(matmul_dtype)
    b1_p = pad_cols(b1, hidden_p).astype(jnp.float32)
    gamma_p = pad_cols(gamma, hidden_p).astype(jnp.float32)   # zero-padded -> kills pad cols
    beta_p = pad_cols(beta, hidden_p).astype(jnp.float32)
    w2_p = pad_rows(pad_cols(w2_t, proj_p), hidden_p).astype(matmul_dtype)
    b2_p = pad_cols(b2, proj_p).astype(jnp.float32)

    itm = jnp.dtype(matmul_dtype).itemsize
    vmem_limit = _vmem_limit_bytes()

    # ---------------- Kernel 1: hidden activations ----------------
    grid1 = (hidden_p // tile_h,)
    flops1 = 2 * B * dim * hidden_p + 8 * B * hidden_p            # matmul + BN/ReLU
    bytes1 = (B * dim * itm + dim * hidden_p * itm
              + 3 * hidden_p * 4 + B * hidden_p * itm)

    h_act = pl.pallas_call(
        hidden_kernel,
        out_shape=jax.ShapeDtypeStruct((B, hidden_p), matmul_dtype),
        grid_spec=pltpu.PrefetchScalarGridSpec(
            num_scalar_prefetch=0,
            grid=grid1,
            in_specs=[
                pl.BlockSpec((B, dim), lambda k: (0, 0)),          # x (resident)
                pl.BlockSpec((dim, tile_h), lambda k: (0, k)),     # w1 tile (streamed once)
                pl.BlockSpec((1, tile_h), lambda k: (0, k)),       # b1 tile
                pl.BlockSpec((1, tile_h), lambda k: (0, k)),       # gamma tile
                pl.BlockSpec((1, tile_h), lambda k: (0, k)),       # beta tile
            ],
            out_specs=pl.BlockSpec((B, tile_h), lambda k: (0, k)),
        ),
        compiler_params=pltpu.CompilerParams(
            dimension_semantics=("parallel",),
            vmem_limit_bytes=vmem_limit,
        ),
        cost_estimate=pl.CostEstimate(
            flops=int(flops1), transcendentals=int(hidden_p),
            bytes_accessed=int(bytes1)),
    )(x_c, w1_p, b1_p, gamma_p, beta_p)

    # ---------------- Kernel 2: projection (reduction over hidden) ----------------
    n_j = proj_p // tile_p
    n_k = hidden_p // tile_h
    grid2 = (n_j, n_k)
    flops2 = 2 * B * hidden_p * proj_p
    bytes2 = (B * hidden_p * itm * n_j          # h re-streamed per proj tile (tiny)
              + hidden_p * proj_p * itm          # w2 streamed once
              + proj_p * 4 + B * proj_p * 4)

    out = pl.pallas_call(
        proj_kernel,
        out_shape=jax.ShapeDtypeStruct((B, proj_p), jnp.float32),
        grid_spec=pltpu.PrefetchScalarGridSpec(
            num_scalar_prefetch=0,
            grid=grid2,
            in_specs=[
                pl.BlockSpec((B, tile_h), lambda j, k: (0, k)),       # h tile
                pl.BlockSpec((tile_h, tile_p), lambda j, k: (k, j)),  # w2 tile
                pl.BlockSpec((1, tile_p), lambda j, k: (0, j)),       # b2 tile
            ],
            out_specs=pl.BlockSpec((B, tile_p), lambda j, k: (0, j)),
            scratch_shapes=[pltpu.VMEM((B, tile_p), jnp.float32)],
        ),
        compiler_params=pltpu.CompilerParams(
            dimension_semantics=("parallel", "arbitrary"),
            vmem_limit_bytes=vmem_limit,
        ),
        cost_estimate=pl.CostEstimate(
            flops=int(flops2), transcendentals=0, bytes_accessed=int(bytes2)),
    )(h_act, w2_p, b2_p)

    return out[:, :proj]


def init_params(key, dim, hidden_size, projection_size):
    """Deterministic PyTorch-style init: U(-1/sqrt(fan_in), 1/sqrt(fan_in))."""
    k1, k2, k3, k4 = jax.random.split(key, 4)
    bound1 = 1.0 / jnp.sqrt(dim)
    w1 = jax.random.uniform(k1, (hidden_size, dim), jnp.float32, -bound1, bound1)
    b1 = jax.random.uniform(k2, (1, hidden_size), jnp.float32, -bound1, bound1)
    gamma = jnp.ones((1, hidden_size), jnp.float32)
    beta = jnp.zeros((1, hidden_size), jnp.float32)
    bound2 = 1.0 / jnp.sqrt(hidden_size)
    w2 = jax.random.uniform(k3, (projection_size, hidden_size), jnp.float32, -bound2, bound2)
    b2 = jax.random.uniform(k4, (1, projection_size), jnp.float32, -bound2, bound2)
    # Transpose to (in, out) for the kernel.
    return w1.T, b1, gamma, beta, w2.T, b2


def mlp_reference(x, w1_t, b1, gamma, beta, w2_t, b2, eps=1e-5):
    """Pure-JAX reference matching PyTorch MLP forward (BN in training mode)."""
    h = x @ w1_t + b1
    mean = jnp.mean(h, axis=0, keepdims=True)
    var = jnp.mean((h - mean) ** 2, axis=0, keepdims=True)
    h = (h - mean) / jnp.sqrt(var + eps) * gamma + beta
    h = jnp.maximum(h, 0.0)
    return h @ w2_t + b2


if __name__ == "__main__":
    # Small shapes consistent with MLP(dim, projection_size, hidden_size).
    # PROJ=192 and tile caps of 128 exercise padding + a (2, 2) reduction grid
    # with the resident accumulator path.
    B, DIM, HIDDEN, PROJ = 8, 32, 256, 192

    key = jax.random.PRNGKey(0)
    kx, kp = jax.random.split(key)
    x = jax.random.normal(kx, (B, DIM), jnp.float32)
    params = init_params(kp, DIM, HIDDEN, PROJ)

    ref = mlp_reference(x, *params)

    # f32 matmul path: tight numerical check.
    out_f32 = mlp_forward(x, *params, matmul_dtype=jnp.float32,
                          tile_h=128, tile_p=128)
    out_f32 = jax.block_until_ready(out_f32)
    assert out_f32.shape == (B, PROJ)
    assert jnp.allclose(out_f32, ref, atol=1e-4, rtol=1e-4), "f32 mismatch vs reference"

    # bf16 matmul path (deployment default): loose check.
    out_bf16 = mlp_forward(x, *params, matmul_dtype=jnp.bfloat16)
    out_bf16 = jax.block_until_ready(out_bf16)
    assert out_bf16.shape == (B, PROJ)
    assert jnp.all(jnp.isfinite(out_bf16))
    assert jnp.allclose(out_bf16, ref, atol=0.15, rtol=0.05), "bf16 mismatch vs reference"

    print("KERNEL_OK")
</pallas_src>

<mosaic_0001>
module attributes {stable_mosaic.version = 11 : i64} {
  func.func @hidden_kernel(%arg0: i32, %arg1: memref<8x32xf32, #tpu.memory_space<vmem>>, %arg2: memref<32x128xf32, #tpu.memory_space<vmem>>, %arg3: memref<1x128xf32, #tpu.memory_space<vmem>>, %arg4: memref<1x128xf32, #tpu.memory_space<vmem>>, %arg5: memref<1x128xf32, #tpu.memory_space<vmem>>, %arg6: memref<8x128xf32, #tpu.memory_space<vmem>>) attributes {dimension_semantics = [#tpu.dimension_semantics<parallel>], iteration_bounds = array<i64: 2>, scalar_prefetch = 0 : i64, scratch_operands = 0 : i64, tpu.core_type = #tpu.core_type<tc>, window_params = [{pipeline_mode = #tpu.pipeline_mode<synchronous>, transform_indices = @transform_0, window_bounds = array<i64: 8, 32>}, {transform_indices = @transform_1, window_bounds = array<i64: 32, 128>}, {transform_indices = @transform_2, window_bounds = array<i64: 1, 128>}, {transform_indices = @transform_3, window_bounds = array<i64: 1, 128>}, {transform_indices = @transform_4, window_bounds = array<i64: 1, 128>}, {transform_indices = @transform_5, window_bounds = array<i64: 8, 128>}]} {
    %c0 = arith.constant 0 : index
    %c0_0 = arith.constant 0 : index
    %0 = vector.load %arg1[%c0, %c0_0] : memref<8x32xf32, #tpu.memory_space<vmem>>, vector<8x32xf32>
    %c0_1 = arith.constant 0 : index
    %c0_2 = arith.constant 0 : index
    %1 = vector.load %arg2[%c0_1, %c0_2] : memref<32x128xf32, #tpu.memory_space<vmem>>, vector<32x128xf32>
    %cst = arith.constant dense<0.000000e+00> : vector<8x128xf32>
    %2 = tpu.matmul %0, %1, %cst {dimension_numbers = #tpu.dot_dimension_numbers<[1], [0], [0], [1], [0, 0, 1, 1], [], []>} : vector<8x32xf32>, vector<32x128xf32>, vector<8x128xf32> -> vector<8x128xf32>
    %c0_3 = arith.constant 0 : index
    %c0_4 = arith.constant 0 : index
    %3 = vector.load %arg3[%c0_3, %c0_4] : memref<1x128xf32, #tpu.memory_space<vmem>>, vector<1x128xf32>
    %4 = vector.broadcast %3 : vector<1x128xf32> to vector<8x128xf32>
    %5 = arith.addf %2, %4 : vector<8x128xf32>
    %cst_5 = arith.constant dense<0.000000e+00> : vector<128xf32>
    %6 = vector.multi_reduction <add>, %5, %cst_5 [0] : vector<8x128xf32> to vector<128xf32>
    %7 = vector.shape_cast %6 : vector<128xf32> to vector<1x128xf32>
    %cst_6 = arith.constant 8.000000e+00 : f32
    %8 = vector.broadcast %cst_6 : f32 to vector<1x128xf32>
    %9 = arith.divf %7, %8 : vector<1x128xf32>
    %10 = arith.mulf %5, %5 : vector<8x128xf32>
    %cst_7 = arith.constant dense<0.000000e+00> : vector<128xf32>
    %11 = vector.multi_reduction <add>, %10, %cst_7 [0] : vector<8x128xf32> to vector<128xf32>
    %12 = vector.shape_cast %11 : vector<128xf32> to vector<1x128xf32>
    %cst_8 = arith.constant 8.000000e+00 : f32
    %13 = vector.broadcast %cst_8 : f32 to vector<1x128xf32>
    %14 = arith.divf %12, %13 : vector<1x128xf32>
    %15 = arith.mulf %9, %9 : vector<1x128xf32>
    %16 = arith.subf %14, %15 : vector<1x128xf32>
    %cst_9 = arith.constant 0.000000e+00 : f32
    %17 = vector.broadcast %cst_9 : f32 to vector<1x128xf32>
    %18 = arith.maximumf %16, %17 : vector<1x128xf32>
    %c0_10 = arith.constant 0 : index
    %c0_11 = arith.constant 0 : index
    %19 = vector.load %arg4[%c0_10, %c0_11] : memref<1x128xf32, #tpu.memory_space<vmem>>, vector<1x128xf32>
    %cst_12 = arith.constant 9.99999974E-6 : f32
    %20 = vector.broadcast %cst_12 : f32 to vector<1x128xf32>
    %21 = arith.addf %18, %20 : vector<1x128xf32>
    %22 = math.rsqrt %21 : vector<1x128xf32>
    %23 = arith.mulf %19, %22 : vector<1x128xf32>
    %c0_13 = arith.constant 0 : index
    %c0_14 = arith.constant 0 : index
    %24 = vector.load %arg5[%c0_13, %c0_14] : memref<1x128xf32, #tpu.memory_space<vmem>>, vector<1x128xf32>
    %25 = arith.mulf %9, %23 : vector<1x128xf32>
    %26 = arith.subf %24, %25 : vector<1x128xf32>
    %27 = vector.broadcast %23 : vector<1x128xf32> to vector<8x128xf32>
    %28 = arith.mulf %5, %27 : vector<8x128xf32>
    %29 = vector.broadcast %26 : vector<1x128xf32> to vector<8x128xf32>
    %30 = arith.addf %28, %29 : vector<8x128xf32>
    %cst_15 = arith.constant 0.000000e+00 : f32
    %31 = vector.broadcast %cst_15 : f32 to vector<8x128xf32>
    %32 = arith.maximumf %30, %31 : vector<8x128xf32>
    %c0_16 = arith.constant 0 : index
    %c0_17 = arith.constant 0 : index
    %33 = vector.load %arg6[%c0_16, %c0_17] : memref<8x128xf32, #tpu.memory_space<vmem>>, vector<8x128xf32>
    tpu.vector_store %arg6[%c0_16, %c0_17], %32 {strides = array<i32>} : memref<8x128xf32, #tpu.memory_space<vmem>>, vector<8x128xf32>,
    return
  }
  func.func @transform_0(%arg0: i32) -> (i32, i32) {
    %c0_i32 = arith.constant 0 : i32
    %c0_i32_0 = arith.constant 0 : i32
    %c0_i32_1 = arith.constant 0 : i32
    return %c0_i32, %c0_i32_0 : i32, i32
  }
  func.func @transform_1(%arg0: i32) -> (i32, i32) {
    %c0_i32 = arith.constant 0 : i32
    %c0_i32_0 = arith.constant 0 : i32
    return %c0_i32, %arg0 : i32, i32
  }
  func.func @transform_2(%arg0: i32) -> (i32, i32) {
    %c0_i32 = arith.constant 0 : i32
    %c0_i32_0 = arith.constant 0 : i32
    return %c0_i32, %arg0 : i32, i32
  }
  func.func @transform_3(%arg0: i32) -> (i32, i32) {
    %c0_i32 = arith.constant 0 : i32
    %c0_i32_0 = arith.constant 0 : i32
    return %c0_i32, %arg0 : i32, i32
  }
  func.func @transform_4(%arg0: i32) -> (i32, i32) {
    %c0_i32 = arith.constant 0 : i32
    %c0_i32_0 = arith.constant 0 : i32
    return %c0_i32, %arg0 : i32, i32
  }
  func.func @transform_5(%arg0: i32) -> (i32, i32) {
    %c0_i32 = arith.constant 0 : i32
    %c0_i32_0 = arith.constant 0 : i32
    return %c0_i32, %arg0 : i32, i32
  }
}

</mosaic_0001>

<llo_original>
// kernel: tpu_custom_call.1
$region0: #{tpu_custom_call.1}
  #allocation0 [shape = 'u32[]', space=smem, size = 0x4, offset = 0x4, fixed_abs, tag = 'smem constant byte address 0x4 - core index']
  #allocation1 [shape = 'u32[144,128]{1,0:T(1,128)}', space=vmem, size = 0x12000, scoped, tag = 'internal scratch']
  %s0 = inlined_call_operand.hbm [shape: f32[8,32], index: 0, kind: input, shape index: {}]
  %s1 = inlined_call_operand.hbm [shape: f32[32,256], index: 1, kind: input, shape index: {}]
  %s2 = inlined_call_operand.vmem [shape: f32[1,256], index: 2, kind: input, shape index: {}]
  %s3 = inlined_call_operand.vmem [shape: f32[1,256], index: 3, kind: input, shape index: {}]
  %s4 = inlined_call_operand.vmem [shape: f32[1,256], index: 4, kind: input, shape index: {}]
  %s5 = inlined_call_operand.hbm [shape: f32[8,256], index: 5, kind: output, shape index: {}]
  %s6 = sld [smem:[#allocation0]]
  $region61: #{tpu_custom_call.1} parent=0
    _
  %s8 = ssub.s32 1, %s6
  %s9 = scalar_select 0, %s8, %s6
  $region1: #{tpu_custom_call.1} parent=0
    #allocation2 [shape = 'u8[4096]{0}', space=vmem, size = 0x1000, scoped, tag = 'input window, operand 0, single buffered']
    #allocation3 [shape = 's32[2]{0}', space=sflag, size = 0x8, scoped, tag = 'scoped memory for tpu_custom_call.1']
    #allocation4 [shape = 's32[2]{0}', space=sflag, size = 0x8, scoped, tag = 'scoped memory for tpu_custom_call.1']
    #allocation5 [shape = 'u8[32768]{0}', space=vmem, size = 0x8000, scoped, tag = 'input window, operand 1']
    #allocation6 [shape = 's32[2]{0}', space=sflag, size = 0x8, scoped, tag = 'scoped memory for tpu_custom_call.1']
    #allocation7 [shape = 'u8[8192]{0}', space=vmem, size = 0x2000, scoped, tag = 'output window, operand 0']
    %10 = vsyncpa [#allocation3], 0
    %11 = vsyncpa [#allocation6], 0
    %s12 = scalar_lea.sflag [#allocation6], 1
    %13 = vsyncpa %s12, 0
    %14 = vsyncpa [#allocation4], 0
    %s15 = scalar_lea.sflag [#allocation4], 1
    %16 = vsyncpa %s15, 0
    loop: start=0, step=1, limit=4
    $region2: #{tpu_custom_call.1} parent=1 // loop_pre_header
      _
    $region3: #{tpu_custom_call.1} parent=1 // loop_header
      %s18 = sphi 0, %s22
      %p19 = scmp.ge.s32.totalorder %s18, 4
      %s26 = sphi 0, %s26
      %s28 = sphi 0, %s26
      %s29 = sphi 0, %s28
      %s43 = sphi 0, %s29
      %s49 = sphi 0, %s51
      %s52 = sphi 0, %s49
      %s53 = sphi 0, %s52
      %s69 = sphi 0, %s53
      %s75 = sphi 0, %s77
      %s78 = sphi 0, %s75
      %s79 = sphi 0, %s78
      %s95 = sphi 0, %s79
      %s101 = sphi 0, %s103
      %s104 = sphi 0, %s101
      %s105 = sphi 0, %s104
      %s121 = sphi 0, %s105
      %s127 = sphi 0, %s129
      %s130 = sphi 0, %s127
      %s131 = sphi 0, %s130
      %s147 = sphi 0, %s131
      %s153 = sphi 0, %s155
      %s156 = sphi 0, %s153
      %s157 = sphi 0, %s156
      %s173 = sphi 0, %s157
    $region4: #{tpu_custom_call.1} parent=1 // loop_header_branch
      %21 = sbr.rel (%p19) target = $region8
    $region5: #{tpu_custom_call.1} parent=1 // loop_body
      %s23 = ssub.s32 %s18, 1
      %s24 = ssub.s32 %s18, 2
      %s25 = sadd.s32 %s18, 1
      %s27 = sadd.s32 %s26, 1
      %p30 = scmp.eq.s32.totalorder %s18, 1
      %p31 = scmp.ne.s32.totalorder %s26, %s28
      %p32 = scmp.eq.s32.totalorder %s18, 0
      %p33 = por %p31, %p32
      %p34 = scmp.ne.s32.totalorder %s26, %s28
      %p35 = scmp.eq.s32.totalorder %s23, 1
      %p36 = por %p34, %p35
      %p37 = scmp.ne.s32.totalorder %s28, %s29
      %p38 = scmp.eq.s32.totalorder %s23, 0
      %p39 = por %p37, %p38
      %p40 = scmp.ne.s32.totalorder %s28, %s29
      %p41 = scmp.eq.s32.totalorder %s24, 1
      %p42 = por %p40, %p41
      %p44 = scmp.ne.s32.totalorder %s29, %s43
      %p45 = scmp.eq.s32.totalorder %s24, 0
      %p46 = por %p44, %p45
      %s47 = ssub.s32 %s18, %s25
      %p48 = scmp.eq.s32.totalorder %s47, 0
      %s50 = sadd.s32 %s49, 1
      %s51 = scalar_select %p48, %s49, %s50
      %p54 = pneg %p48
      %p55 = scmp.eq.s32.totalorder %s18, 1
      %p56 = por %p54, %p55
      %p57 = scmp.ne.s32.totalorder %s49, %s52
      %p58 = scmp.eq.s32.totalorder %s18, 0
      %p59 = por %p57, %p58
      %p60 = scmp.ne.s32.totalorder %s49, %s52
      %p61 = scmp.eq.s32.totalorder %s23, 1
      %p62 = por %p60, %p61
      %p63 = scmp.ne.s32.totalorder %s52, %s53
      %p64 = scmp.eq.s32.totalorder %s23, 0
      %p65 = por %p63, %p64
      %p66 = scmp.ne.s32.totalorder %s52, %s53
      %p67 = scmp.eq.s32.totalorder %s24, 1
      %p68 = por %p66, %p67
      %p70 = scmp.ne.s32.totalorder %s53, %s69
      %p71 = scmp.eq.s32.totalorder %s24, 0
      %p72 = por %p70, %p71
      %s73 = ssub.s32 %s18, %s25
      %p74 = scmp.eq.s32.totalorder %s73, 0
      %s76 = sadd.s32 %s75, 1
      %s77 = scalar_select %p74, %s75, %s76
      %p80 = pneg %p74
      %p81 = scmp.eq.s32.totalorder %s18, 1
      %p82 = por %p80, %p81
      %p83 = scmp.ne.s32.totalorder %s75, %s78
      %p84 = scmp.eq.s32.totalorder %s18, 0
      %p85 = por %p83, %p84
      %p86 = scmp.ne.s32.totalorder %s75, %s78
      %p87 = scmp.eq.s32.totalorder %s23, 1
      %p88 = por %p86, %p87
      %p89 = scmp.ne.s32.totalorder %s78, %s79
      %p90 = scmp.eq.s32.totalorder %s23, 0
      %p91 = por %p89, %p90
      %p92 = scmp.ne.s32.totalorder %s78, %s79
      %p93 = scmp.eq.s32.totalorder %s24, 1
      %p94 = por %p92, %p93
      %p96 = scmp.ne.s32.totalorder %s79, %s95
      %p97 = scmp.eq.s32.totalorder %s24, 0
      %p98 = por %p96, %p97
      %s99 = ssub.s32 %s18, %s25
      %p100 = scmp.eq.s32.totalorder %s99, 0
      %s102 = sadd.s32 %s101, 1
      %s103 = scalar_select %p100, %s101, %s102
      %p106 = pneg %p100
      %p107 = scmp.eq.s32.totalorder %s18, 1
      %p108 = por %p106, %p107
      %p109 = scmp.ne.s32.totalorder %s101, %s104
      %p110 = scmp.eq.s32.totalorder %s18, 0
      %p111 = por %p109, %p110
      %p112 = scmp.ne.s32.totalorder %s101, %s104
      %p113 = scmp.eq.s32.totalorder %s23, 1
      %p114 = por %p112, %p113
      %p115 = scmp.ne.s32.totalorder %s104, %s105
      %p116 = scmp.eq.s32.totalorder %s23, 0
      %p117 = por %p115, %p116
      %p118 = scmp.ne.s32.totalorder %s104, %s105
      %p119 = scmp.eq.s32.totalorder %s24, 1
      %p120 = por %p118, %p119
      %p122 = scmp.ne.s32.totalorder %s105, %s121
      %p123 = scmp.eq.s32.totalorder %s24, 0
      %p124 = por %p122, %p123
      %s125 = ssub.s32 %s18, %s25
      %p126 = scmp.eq.s32.totalorder %s125, 0
      %s128 = sadd.s32 %s127, 1
      %s129 = scalar_select %p126, %s127, %s128
      %p132 = pneg %p126
      %p133 = scmp.eq.s32.totalorder %s18, 1
      %p134 = por %p132, %p133
      %p135 = scmp.ne.s32.totalorder %s127, %s130
      %p136 = scmp.eq.s32.totalorder %s18, 0
      %p137 = por %p135, %p136
      %p138 = scmp.ne.s32.totalorder %s127, %s130
      %p139 = scmp.eq.s32.totalorder %s23, 1
      %p140 = por %p138, %p139
      %p141 = scmp.ne.s32.totalorder %s130, %s131
      %p142 = scmp.eq.s32.totalorder %s23, 0
      %p143 = por %p141, %p142
      %p144 = scmp.ne.s32.totalorder %s130, %s131
      %p145 = scmp.eq.s32.totalorder %s24, 1
      %p146 = por %p144, %p145
      %p148 = scmp.ne.s32.totalorder %s131, %s147
      %p149 = scmp.eq.s32.totalorder %s24, 0
      %p150 = por %p148, %p149
      %s151 = ssub.s32 %s18, %s25
      %p152 = scmp.eq.s32.totalorder %s151, 0
      %s154 = sadd.s32 %s153, 1
      %s155 = scalar_select %p152, %s153, %s154
      %p158 = pneg %p152
      %p159 = scmp.eq.s32.totalorder %s18, 1
      %p160 = por %p158, %p159
      %p161 = scmp.ne.s32.totalorder %s153, %s156
      %p162 = scmp.eq.s32.totalorder %s18, 0
      %p163 = por %p161, %p162
      %p164 = scmp.ne.s32.totalorder %s153, %s156
      %p165 = scmp.eq.s32.totalorder %s23, 1
      %p166 = por %p164, %p165
      %p167 = scmp.ne.s32.totalorder %s156, %s157
      %p168 = scmp.eq.s32.totalorder %s23, 0
      %p169 = por %p167, %p168
      %p170 = scmp.ne.s32.totalorder %s156, %s157
      %p171 = scmp.eq.s32.totalorder %s24, 1
      %p172 = por %p170, %p171
      %p174 = scmp.ne.s32.totalorder %s157, %s173
      %p175 = scmp.eq.s32.totalorder %s24, 0
      %p176 = por %p174, %p175
      %p177 = scmp.le.s32.totalorder 1, %s18
      %p178 = scmp.lt.s32.totalorder %s18, 3
      %p179 = pnand %p177, %p178
      %p180 = pneg %p179
      // Predicated region
      $region9: #{tpu_custom_call.1} parent=5 // pred_check
        _
      $region10: #{tpu_custom_call.1} parent=5 // pred_check_branch
        %182 = sbr.rel (%p179) target = $region12
      $region11: #{tpu_custom_call.1} parent=5 // pred_region
        %s183 = ssub.s32 %s18, 1
        // Predicated region
        $region13: #{tpu_custom_call.1} parent=11 // pred_check
          %p184 = pneg %p39
        $region14: #{tpu_custom_call.1} parent=11 // pred_check_branch
          %186 = sbr.rel (%p184) target = $region16
        $region15: #{tpu_custom_call.1} parent=11 // pred_region
          %s188 = ssub.s32 128, 128
          %189 = vsyncadd [#allocation3], %s188
          %s191 = sshll.u32 [#allocation2], 4
          %s192 = int_to_ptr.vmem [resolvable:$true] %s191
          %194 = dma.hbm_to_vmem [thread:$0]  %s0, 128, %s192, [#allocation3]
        $region16: #{tpu_custom_call.1} parent=11 // pred_fallthru
          _
      $region12: #{tpu_custom_call.1} parent=5 // pred_fallthru
        _
      %p195 = scmp.lt.s32.totalorder %s18, 2
      // Predicated region
      $region17: #{tpu_custom_call.1} parent=5 // pred_check
        %p196 = pneg %p195
      $region18: #{tpu_custom_call.1} parent=5 // pred_check_branch
        %198 = sbr.rel (%p196) target = $region20
      $region19: #{tpu_custom_call.1} parent=5 // pred_region
        // Predicated region
        $region21: #{tpu_custom_call.1} parent=19 // pred_check
          %p199 = pneg %p59
        $region22: #{tpu_custom_call.1} parent=19 // pred_check_branch
          %201 = sbr.rel (%p199) target = $region24
        $region23: #{tpu_custom_call.1} parent=19 // pred_region
          %s202 = sand.u32 %s49, 1
          %s203 = scalar_lea.sflag [#allocation6], %s202
          %s204 = sand.u32 %s49, 1
          %s205 = smul.addr %s204, 32
          %s206 = scalar_lea.vmem [#allocation5], %s205
          %s208 = ssub.s32 512, 512
          %209 = vsyncadd %s203, %s208
          %s210 = smul.addr %s18, 128
          %s211 = scalar_lea.hbm %s1, %s210
          %s212 = sshll.u32 %s206, 4
          %s213 = int_to_ptr.vmem [resolvable:$true] %s212
          %218 = dma.hbm_to_vmem [thread:$0]  %s211, 512, %s213, %s203, 256, 128, 8
        $region24: #{tpu_custom_call.1} parent=19 // pred_fallthru
          _
        // Predicated region
        $region25: #{tpu_custom_call.1} parent=19 // pred_check
          %p219 = pneg %p85
        $region26: #{tpu_custom_call.1} parent=19 // pred_check_branch
          %221 = sbr.rel (%p219) target = $region28
        $region27: #{tpu_custom_call.1} parent=19 // pred_region
          %p222 = scmp.lt.s32.totalorder %s18, 1
          %s223 = scalar_select %p222, %s18, 1
          %s224 = scalar_lea.vmem %s2, %s223
        $region28: #{tpu_custom_call.1} parent=19 // pred_fallthru
          _
        // Predicated region
        $region29: #{tpu_custom_call.1} parent=19 // pred_check
          %p225 = pneg %p111
        $region30: #{tpu_custom_call.1} parent=19 // pred_check_branch
          %227 = sbr.rel (%p225) target = $region32
        $region31: #{tpu_custom_call.1} parent=19 // pred_region
          %p228 = scmp.lt.s32.totalorder %s18, 1
          %s229 = scalar_select %p228, %s18, 1
          %s230 = scalar_lea.vmem %s3, %s229
        $region32: #{tpu_custom_call.1} parent=19 // pred_fallthru
          _
        // Predicated region
        $region33: #{tpu_custom_call.1} parent=19 // pred_check
          %p231 = pneg %p137
        $region34: #{tpu_custom_call.1} parent=19 // pred_check_branch
          %233 = sbr.rel (%p231) target = $region36
        $region35: #{tpu_custom_call.1} parent=19 // pred_region
          %p234 = scmp.lt.s32.totalorder %s18, 1
          %s235 = scalar_select %p234, %s18, 1
          %s236 = scalar_lea.vmem %s4, %s235
        $region36: #{tpu_custom_call.1} parent=19 // pred_fallthru
          _
      $region20: #{tpu_custom_call.1} parent=5 // pred_fallthru
        _
      %p237 = scmp.le.s32.totalorder 1, %s18
      %p238 = scmp.lt.s32.totalorder %s18, 3
      %p239 = pnand %p237, %p238
      %p240 = pneg %p239
      // Predicated region
      $region37: #{tpu_custom_call.1} parent=5 // pred_check
        _
      $region38: #{tpu_custom_call.1} parent=5 // pred_check_branch
        %242 = sbr.rel (%p239) target = $region40
      $region39: #{tpu_custom_call.1} parent=5 // pred_region
        %s243 = ssub.s32 %s18, 1
        // Predicated region
        $region41: #{tpu_custom_call.1} parent=39 // pred_check
          %p244 = pneg %p39
        $region42: #{tpu_custom_call.1} parent=39 // pred_check_branch
          %246 = sbr.rel (%p244) target = $region44
        $region43: #{tpu_custom_call.1} parent=39 // pred_region
          %247 = dma.done [#allocation3], 128
        $region44: #{tpu_custom_call.1} parent=39 // pred_fallthru
          _
        %s248 = sand.u32 %s52, 1
        %s249 = scalar_lea.sflag [#allocation6], %s248
        %s250 = sand.u32 %s52, 1
        %s251 = smul.addr %s250, 32
        %s252 = scalar_lea.vmem [#allocation5], %s251
        // Predicated region
        $region45: #{tpu_custom_call.1} parent=39 // pred_check
          %p253 = pneg %p65
        $region46: #{tpu_custom_call.1} parent=39 // pred_check_branch
          %255 = sbr.rel (%p253) target = $region48
        $region47: #{tpu_custom_call.1} parent=39 // pred_region
          %256 = dma.done %s249, 512
        $region48: #{tpu_custom_call.1} parent=39 // pred_fallthru
          _
        %p257 = pneg %p39
        %p258 = pneg %p36
        %s259 = sand.u32 %s52, 1
        %s260 = scalar_lea.sflag [#allocation6], %s259
        %s261 = sand.u32 %s52, 1
        %s262 = smul.addr %s261, 32
        %s263 = scalar_lea.vmem [#allocation5], %s262
        %p264 = pneg %p65
        %p265 = pneg %p62
        %p266 = scmp.lt.s32.totalorder %s23, 1
        %s267 = scalar_select %p266, %s23, 1
        %s268 = scalar_lea.vmem %s2, %s267
        %p269 = pneg %p91
        %p270 = pneg %p88
        %p271 = scmp.lt.s32.totalorder %s23, 1
        %s272 = scalar_select %p271, %s23, 1
        %s273 = scalar_lea.vmem %s3, %s272
        %p274 = pneg %p117
        %p275 = pneg %p114
        %p276 = scmp.lt.s32.totalorder %s23, 1
        %s277 = scalar_select %p276, %s23, 1
        %s278 = scalar_lea.vmem %s4, %s277
        %p279 = pneg %p143
        %p280 = pneg %p140
        %p281 = pneg %p169
        %p282 = pneg %p166
        %s283 = sand.u32 %s156, 1
        %s284 = scalar_lea.sflag [#allocation4], %s283
        %s285 = sand.u32 %s156, 1
        %s286 = smul.addr %s285, 8
        %s287 = scalar_lea.vmem [#allocation7], %s286
        %p288 = scmp.lt.s32.totalorder %s23, 1
        %s289 = scalar_select %p288, %s23, 1
        %s290 = scalar_lea.vmem %s2, %s289
        %p291 = scmp.lt.s32.totalorder %s23, 1
        %s292 = scalar_select %p291, %s23, 1
        %s293 = scalar_lea.vmem %s3, %s292
        %p294 = scmp.lt.s32.totalorder %s23, 1
        %s295 = scalar_select %p294, %s23, 1
        %s296 = scalar_lea.vmem %s4, %s295
        %v297 = vld [vmem:[#allocation2] sm:$0xff]
        %v298 = vld [vmem:[%s252] sm:$0xff]
        %v299 = vld [vmem:[%s252 + $0x8] sm:$0xff]
        %v300 = vld [vmem:[%s252 + $0x10] sm:$0xff]
        %v301 = vld [vmem:[%s252 + $0x18] sm:$0xff]
        %v302 = vld [vmem:[%s290] sm:$0x1]
        %v304 = vlaneseq
        %v305 = vshrl.u32 %v304, 7
        %v306 = vsub.s32 0, %v305
        %v307 = vrot.slane %v302, %v306
        %vm309 = vcmask 261120
        %v311 = vsel %vm309, %v297, 0
        %313 = vmatprep.subr.mxu0 0.0
        %314 = vmatpush1.msra.mxu0 0.0
        %315 = vmatprep.subr.mxu0 0.0
        %316 = vmatpush1.msra.mxu0 0.0
        %317 = vmatprep.subr.mxu0 0.0
        %318 = vmatpush1.msra.mxu0 0.0
        %319 = vmatprep.subr.mxu0 0.0
        %320 = vmatpush1.msra.mxu0 0.0
        %321 = vmatprep.subr.mxu0 0.0
        %322 = vmatpush1.msra.mxu0 0.0
        %323 = vmatprep.subr.mxu0 0.0
        %324 = vmatpush1.msra.mxu0 0.0
        %325 = vmatprep.subr.mxu0 0.0
        %326 = vmatpush1.msra.mxu0 0.0
        %327 = vmatprep.subr.mxu0 0.0
        %328 = vmatpush1.msra.mxu0 0.0
        %329 = vmatprep.subr.mxu0 0.0
        %330 = vmatpush1.msra.mxu0 0.0
        %331 = vmatprep.subr.mxu0 0.0
        %332 = vmatpush1.msra.mxu0 0.0
        %333 = vmatprep.subr.mxu0 0.0
        %334 = vmatpush1.msra.mxu0 0.0
        %335 = vmatprep.subr.mxu0 0.0
        %336 = vmatpush1.msra.mxu0 0.0
        %337 = vmatprep.subr.mxu0 0.0
        %338 = vmatpush1.msra.mxu0 %v301
        %339 = vmatprep.subr.mxu0 0.0
        %340 = vmatpush1.msra.mxu0 %v300
        %341 = vmatprep.subr.mxu0 0.0
        %342 = vmatpush1.msra.mxu0 %v299
        %343 = vmatprep.subr.mxu0 0.0
        %344 = vmatpush1.msra.mxu0 %v298
        %345 = vmatprep.subr.mxu0 0.0
        %346 = vmatpush2.msra.mxu0 0.0
        %347 = vmatprep.subr.mxu0 0.0
        %348 = vmatpush2.msra.mxu0 0.0
        %349 = vmatprep.subr.mxu0 0.0
        %350 = vmatpush2.msra.mxu0 0.0
        %351 = vmatprep.subr.mxu0 0.0
        %352 = vmatpush2.msra.mxu0 0.0
        %353 = vmatprep.subr.mxu0 0.0
        %354 = vmatpush2.msra.mxu0 0.0
        %355 = vmatprep.subr.mxu0 0.0
        %356 = vmatpush2.msra.mxu0 0.0
        %357 = vmatprep.subr.mxu0 0.0
        %358 = vmatpush2.msra.mxu0 0.0
        %359 = vmatprep.subr.mxu0 0.0
        %360 = vmatpush2.msra.mxu0 0.0
        %361 = vmatprep.subr.mxu0 0.0
        %362 = vmatpush2.msra.mxu0 0.0
        %363 = vmatprep.subr.mxu0 0.0
        %364 = vmatpush2.msra.mxu0 0.0
        %365 = vmatprep.subr.mxu0 0.0
        %366 = vmatpush2.msra.mxu0 0.0
        %367 = vmatprep.subr.mxu0 0.0
        %368 = vmatpush2.msra.mxu0 0.0
        %369 = vmatprep.subr.mxu0 0.0
        %370 = vmatpush2.msra.mxu0 0.0
        %371 = vmatprep.subr.mxu0 0.0
        %372 = vmatpush2.msra.mxu0 0.0
        %373 = vmatprep.subr.mxu0 0.0
        %374 = vmatpush2.msra.mxu0 0.0
        %375 = vmatprep.subr.mxu0 0.0
        %376 = vmatpush2.msra.mxu0 0.0
        %377 = vmatprep.mubr.f32.mxu0 0.0
        %378 = vmatmul.mubr.f32.gmra.mxu0 %v311
        %v379 = vpop.f32.mrf.mxu0
        %v380 = vadd.f32 %v307, %v379
        %v381 = vpop.f32.mrf.mxu0
        %382 = vdwg.mxu0
        %v383 = vrot.slane %v380, 4
        %v384 = vadd.f32 %v380, %v383
        %v385 = vrot.slane %v384, 2
        %v386 = vadd.f32 %v384, %v385
        %v387 = vrot.slane %v386, 1
        %v388 = vadd.f32 %v386, %v387
        %v389 = vrcp.pop 8.0
        %v390 = vmul.f32 %v388, %v389
        %v391 = vmul.f32 %v380, %v380
        %v392 = vrot.slane %v391, 4
        %v393 = vadd.f32 %v391, %v392
        %v394 = vrot.slane %v393, 2
        %v395 = vadd.f32 %v393, %v394
        %v396 = vrot.slane %v395, 1
        %v397 = vadd.f32 %v395, %v396
        %v398 = vmul.f32 %v397, %v389
        %v399 = vmul.f32 %v390, %v390
        %v400 = vsub.f32 %v398, %v399
        %v401 = vmax.f32 %v400, 0.0
        %v402 = vld [vmem:[%s293] sm:$0x1]
        %v403 = vadd.f32 %v401, 1e-05
        %v404 = vrsqrt.pop %v403
        %v405 = vmul.f32 %v402, %v404
        %v406 = vld [vmem:[%s296] sm:$0x1]
        %v407 = vmul.f32 %v390, %v405
        %v408 = vsub.f32 %v406, %v407
        %v410 = vlaneseq
        %v411 = vshrl.u32 %v410, 7
        %v412 = vsub.s32 0, %v411
        %v413 = vrot.slane %v405, %v412
        %v415 = vmul.f32 %v380, %v413
        %v417 = vlaneseq
        %v418 = vshrl.u32 %v417, 7
        %v419 = vsub.s32 0, %v418
        %v420 = vrot.slane %v408, %v419
        %v422 = vadd.f32 %v415, %v420
        %v423 = vmax.f32 %v422, 0.0
        %424 = vst [vmem:[%s287] sm:$0xff] %v423
        %s425 = sand.u32 %s156, 1
        %s426 = scalar_lea.sflag [#allocation4], %s425
        %s427 = sand.u32 %s156, 1
        %s428 = smul.addr %s427, 8
        %s429 = scalar_lea.vmem [#allocation7], %s428
        // Predicated region
        $region49: #{tpu_custom_call.1} parent=39 // pred_check
          %p430 = pneg %p166
        $region50: #{tpu_custom_call.1} parent=39 // pred_check_branch
          %432 = sbr.rel (%p430) target = $region52
        $region51: #{tpu_custom_call.1} parent=39 // pred_region
          %s434 = ssub.s32 128, 128
          %435 = vsyncadd %s426, %s434
          %s436 = smul.addr %s23, 128
          %s437 = scalar_lea.hbm %s5, %s436
          %s439 = sshll.u32 %s429, 4
          %s440 = int_to_ptr.vmem [resolvable:$true] %s439
          %442 = dma.vmem_to_hbm [thread:$0]  %s440, 128, %s437, %s426
        $region52: #{tpu_custom_call.1} parent=39 // pred_fallthru
          _
      $region40: #{tpu_custom_call.1} parent=5 // pred_fallthru
        _
      %p443 = scmp.le.s32.totalorder 2, %s18
      // Predicated region
      $region53: #{tpu_custom_call.1} parent=5 // pred_check
        %p444 = pneg %p443
      $region54: #{tpu_custom_call.1} parent=5 // pred_check_branch
        %446 = sbr.rel (%p444) target = $region56
      $region55: #{tpu_custom_call.1} parent=5 // pred_region
        %s447 = ssub.s32 %s18, 2
        // Predicated region
        $region57: #{tpu_custom_call.1} parent=55 // pred_check
          %p448 = pneg %p172
        $region58: #{tpu_custom_call.1} parent=55 // pred_check_branch
          %450 = sbr.rel (%p448) target = $region60
        $region59: #{tpu_custom_call.1} parent=55 // pred_region
          %s451 = sand.u32 %s157, 1
          %s452 = scalar_lea.sflag [#allocation4], %s451
          %s453 = sand.u32 %s157, 1
          %s454 = smul.addr %s453, 8
          %s455 = scalar_lea.vmem [#allocation7], %s454
          %456 = dma.done %s452, 128
        $region60: #{tpu_custom_call.1} parent=55 // pred_fallthru
          _
      $region56: #{tpu_custom_call.1} parent=5 // pred_fallthru
        _
    $region6: #{tpu_custom_call.1} parent=1 // loop_footer
      %s22 = sadd.s32 1, %s18
    $region7: #{tpu_custom_call.1} parent=1 // loop_footer_branch
      %17 = sbr.rel target = $region3
    $region8: #{tpu_custom_call.1} parent=1 // loop_exit
      _
    %457 = vsyncpa [#allocation3], 1
    %s458 = scalar_lea.sflag [#allocation3], 1
    %459 = vsyncpa %s458, 1
    %460 = vsyncpa [#allocation6], 1
    %s461 = scalar_lea.sflag [#allocation6], 1
    %462 = vsyncpa %s461, 1
    %463 = vsyncpa [#allocation4], 1
    %s464 = scalar_lea.sflag [#allocation4], 1
    %465 = vsyncpa %s464, 1

</llo_original>
